<compile_context>
chip_gen: v5e
topology: v5e:2x2
jax: 0.10.0
libtpu: 0.0.40
codegen_flags: <defaults>
</compile_context>

<pallas_src>
import itertools

import numpy as np
import jax
import jax.numpy as jnp
from jax.experimental import pallas as pl
from jax.experimental.pallas import tpu as pltpu


# ----------------------------------------------------------------------------
# Constant permutation-one-hot tensor for the exact (brute force) assignment.
# mats[k, t, p] = 1  iff  permutation k maps target slot t -> predicted object p.
# ----------------------------------------------------------------------------
def _permutation_matrices(n):
    perms = list(itertools.permutations(range(n)))
    mats = np.zeros((len(perms), n, n), dtype=np.float32)
    for k, perm in enumerate(perms):
        for t, p in enumerate(perm):
            mats[k, t, p] = 1.0
    return jnp.asarray(mats)


# ----------------------------------------------------------------------------
# Fused kernel: matching cost + optimal assignment + matched gather + soft CE.
# All inputs live in VMEM for the whole (single) kernel invocation.
# ----------------------------------------------------------------------------
def _fused_loss_kernel(mask_ref, tgt_ref, perm_ref, out_ref):
    # mask_ref, tgt_ref: (B, n, hw) f32   perm_ref: (P, n, n) f32   out_ref: (1,1) f32
    perm_mats = perm_ref[...]
    P, n, _ = perm_mats.shape
    B = mask_ref.shape[0]

    def onehot_argmax(x):
        # First-occurrence argmax over the object (sublane) axis, one-hot encoded,
        # using only max/min reductions (robust Mosaic lowering).
        iota = jax.lax.broadcasted_iota(jnp.int32, x.shape, 0)
        mx = jnp.max(x, axis=0, keepdims=True)
        first = jnp.min(jnp.where(x == mx, iota, n), axis=0, keepdims=True)
        return (iota == first).astype(jnp.float32)

    ce = jnp.zeros((1, 1), jnp.float32)
    for b in range(B):  # B is tiny and static: unrolled, still one kernel launch
        pred = mask_ref[b].astype(jnp.float32)   # (n, hw)
        tgt = tgt_ref[b].astype(jnp.float32)     # (n, hw)

        pred_oh = onehot_argmax(pred)
        tgt_oh = onehot_argmax(tgt)

        # cost[t, p] = -<onehot(target)_t, onehot(pred)_p>
        # Contract the pixel (lane) axis of both operands directly: no .T relayout.
        cost = -jax.lax.dot_general(
            tgt_oh, pred_oh,
            dimension_numbers=(((1,), (1,)), ((), ())),
            preferred_element_type=jnp.float32)                    # (n, n)

        # Exact assignment: total cost of every permutation (one-hot weighted sum),
        # then first-minimum selection (matches argmin tie-breaking).
        t1 = jnp.sum(cost[None, :, :] * perm_mats, axis=-1)        # (P, n)
        totals = jnp.sum(t1, axis=-1, keepdims=True)               # (P, 1)
        kiota = jax.lax.broadcasted_iota(jnp.int32, (P, 1), 0)
        tmin = jnp.min(totals, axis=0, keepdims=True)
        firstk = jnp.min(jnp.where(totals == tmin, kiota, P),
                         axis=0, keepdims=True)
        sel = (kiota == firstk).astype(jnp.float32)                # (P, 1)

        # Winning permutation applied as a one-hot matmul (gather-free):
        # matched[t, :] = pred[perm[t], :]
        best_mat = jnp.sum(sel[:, :, None] * perm_mats, axis=0)    # (n, n)
        matched = jnp.dot(best_mat, pred,
                          preferred_element_type=jnp.float32)      # (n, hw)

        # Soft-target cross entropy (nn.CrossEntropyLoss with probability targets),
        # summed over all pixels of this sample.
        m = jnp.max(matched, axis=0, keepdims=True)
        lse = jnp.log(jnp.sum(jnp.exp(matched - m), axis=0, keepdims=True)) + m
        ce = ce + jnp.sum(tgt * (lse - matched))

    out_ref[...] = ce


def fused_matching_ce_sum(mask_flat, tgt_flat, perm_mats):
    out = pl.pallas_call(
        _fused_loss_kernel,
        out_shape=jax.ShapeDtypeStruct((1, 1), jnp.float32),
        in_specs=[pl.BlockSpec(memory_space=pltpu.MemorySpace.VMEM),
                  pl.BlockSpec(memory_space=pltpu.MemorySpace.VMEM),
                  pl.BlockSpec(memory_space=pltpu.MemorySpace.VMEM)],
        out_specs=pl.BlockSpec(memory_space=pltpu.MemorySpace.VMEM),
    )(mask_flat, tgt_flat, perm_mats)
    return out[0, 0]


# ----------------------------------------------------------------------------
# Glue: bilinear resized crop as weight-matrix matmuls (torchvision
# resized_crop equivalent, bilinear, align_corners=False sampling).
# TODO(synk): torchvision's default antialiased downscale filter is not replicated.
# ----------------------------------------------------------------------------
def _crop_weight_matrices(params, in_h, in_w, size):
    # params: (B, 4) int32 = (top, left, height, width)
    def one(p):
        top, left, h, w = p[0], p[1], p[2], p[3]
        hf = h.astype(jnp.float32)
        wf = w.astype(jnp.float32)
        ys = (jnp.arange(size, dtype=jnp.float32) + 0.5) * (hf / size) - 0.5
        xs = (jnp.arange(size, dtype=jnp.float32) + 0.5) * (wf / size) - 0.5
        ys = jnp.clip(ys, 0.0, hf - 1.0) + top.astype(jnp.float32)
        xs = jnp.clip(xs, 0.0, wf - 1.0) + left.astype(jnp.float32)
        y0 = jnp.floor(ys)
        x0 = jnp.floor(xs)
        wy = ys - y0
        wx = xs - x0
        y0i = y0.astype(jnp.int32)
        x0i = x0.astype(jnp.int32)
        y1i = jnp.minimum(y0i + 1, top + h - 1)
        x1i = jnp.minimum(x0i + 1, left + w - 1)
        rows = jnp.arange(in_h, dtype=jnp.int32)
        cols = jnp.arange(in_w, dtype=jnp.int32)
        wy_mat = ((rows[None, :] == y0i[:, None]).astype(jnp.float32) * (1.0 - wy)[:, None]
                  + (rows[None, :] == y1i[:, None]).astype(jnp.float32) * wy[:, None])
        wx_mat = ((cols[:, None] == x0i[None, :]).astype(jnp.float32) * (1.0 - wx)[None, :]
                  + (cols[:, None] == x1i[None, :]).astype(jnp.float32) * wx[None, :])
        return wy_mat, wx_mat          # (size, H), (W, size)
    return jax.vmap(one)(params)


def crop_views(view, params, size):
    # view: (B, n, H, W); params: (B, 4) int32 = (top, left, height, width)
    B, n, H, W = view.shape
    wy, wx = _crop_weight_matrices(params, H, W, size)   # (B,size,H), (B,W,size)
    v = view.astype(jnp.float32)
    tmp = jnp.einsum('boh,bnhw->bnow', wy, v)            # rows interpolation
    return jnp.einsum('bnow,bwp->bnop', tmp, wx)         # cols interpolation -> (B,n,size,size)


# ----------------------------------------------------------------------------
# Full ConsistencyLoss forward.
# ----------------------------------------------------------------------------
def consistency_loss(mask, mask_target, cropping_params, global_step=0,
                     loss_weight=0.25):
    B, n, size, _ = mask.shape
    hw = size * size

    tgt_cropped = crop_views(mask_target, cropping_params, size)    # (B, n, size, size)
    mask_flat = mask.reshape(B, n, hw).astype(jnp.float32)
    tgt_flat = tgt_cropped.reshape(B, n, hw)

    # TODO(synk): scipy Hungarian matcher replaced by an exact in-kernel
    # brute-force search over all n! permutations (identical optimum for small n).
    perm_mats = _permutation_matrices(n)                             # (n!, n, n)
    ce_sum = fused_matching_ce_sum(mask_flat, tgt_flat, perm_mats)   # scalar, Pallas

    weight = loss_weight                                             # _constant_weight
    return weight * ce_sum / (B * hw)


if __name__ == "__main__":
    key = jax.random.PRNGKey(0)
    k1, k2 = jax.random.split(key)

    B, n_objects, size = 2, 4, 16
    tgt_size = 24

    # Soft object masks (as produced upstream), channels-first (NCHW).
    mask = jax.nn.softmax(
        jax.random.normal(k1, (B, n_objects, size, size), dtype=jnp.float32), axis=1)
    mask_target = jax.nn.softmax(
        jax.random.normal(k2, (B, n_objects, tgt_size, tgt_size), dtype=jnp.float32), axis=1)
    # (top, left, height, width) per sample, all in-bounds of the 24x24 target.
    cropping_params = jnp.array([[2, 3, 18, 16],
                                 [0, 4, 20, 18]], dtype=jnp.int32)

    loss_fn = jax.jit(consistency_loss)
    loss = loss_fn(mask, mask_target, cropping_params)
    jax.block_until_ready(loss)
    assert loss.shape == () and bool(jnp.isfinite(loss))
    print("KERNEL_OK")
</pallas_src>

<mosaic_0001>
module attributes {stable_mosaic.version = 11 : i64} {
  func.func @_fused_loss_kernel(%arg0: memref<2x4x256xf32, #tpu.memory_space<vmem>>, %arg1: memref<2x4x256xf32, #tpu.memory_space<vmem>>, %arg2: memref<24x4x4xf32, #tpu.memory_space<vmem>>, %arg3: memref<1x1xf32, #tpu.memory_space<vmem>>) attributes {dimension_semantics = [], scalar_prefetch = 0 : i64, scratch_operands = 0 : i64, tpu.core_type = #tpu.core_type<tc>} {
    %c0 = arith.constant 0 : index
    %c0_0 = arith.constant 0 : index
    %c0_1 = arith.constant 0 : index
    %0 = vector.load %arg2[%c0, %c0_0, %c0_1] : memref<24x4x4xf32, #tpu.memory_space<vmem>>, vector<24x4x4xf32>
    %cst = arith.constant 0.000000e+00 : f32
    %1 = vector.broadcast %cst : f32 to vector<1x1xf32>
    %c0_2 = arith.constant 0 : index
    %c0_3 = arith.constant 0 : index
    %c0_4 = arith.constant 0 : index
    %2 = vector.load %arg0[%c0_2, %c0_3, %c0_4] : memref<2x4x256xf32, #tpu.memory_space<vmem>>, vector<1x4x256xf32>
    %3 = vector.shape_cast %2 : vector<1x4x256xf32> to vector<4x256xf32>
    %c0_5 = arith.constant 0 : index
    %c0_6 = arith.constant 0 : index
    %c0_7 = arith.constant 0 : index
    %4 = vector.load %arg1[%c0_5, %c0_6, %c0_7] : memref<2x4x256xf32, #tpu.memory_space<vmem>>, vector<1x4x256xf32>
    %5 = vector.shape_cast %4 : vector<1x4x256xf32> to vector<4x256xf32>
    %6 = tpu.iota {dimensions = array<i32: 0>} : vector<4x256xi32>
    %cst_8 = arith.constant dense<0xFF800000> : vector<256xf32>
    %7 = vector.multi_reduction <maximumf>, %3, %cst_8 [0] : vector<4x256xf32> to vector<256xf32>
    %8 = vector.shape_cast %7 : vector<256xf32> to vector<1x256xf32>
    %9 = vector.broadcast %8 : vector<1x256xf32> to vector<4x256xf32>
    %10 = arith.cmpf oeq, %3, %9 : vector<4x256xf32>
    %c4_i32 = arith.constant 4 : i32
    %11 = vector.broadcast %c4_i32 : i32 to vector<4x256xi32>
    %12 = arith.select %10, %6, %11 : vector<4x256xi1>, vector<4x256xi32>
    %cst_9 = arith.constant dense<2147483647> : vector<256xi32>
    %13 = vector.multi_reduction <minsi>, %12, %cst_9 [0] : vector<4x256xi32> to vector<256xi32>
    %14 = vector.shape_cast %13 : vector<256xi32> to vector<1x256xi32>
    %15 = vector.broadcast %14 : vector<1x256xi32> to vector<4x256xi32>
    %16 = arith.cmpi eq, %6, %15 : vector<4x256xi32>
    %17 = arith.extui %16 : vector<4x256xi1> to vector<4x256xi32>
    %18 = arith.sitofp %17 : vector<4x256xi32> to vector<4x256xf32>
    %19 = tpu.iota {dimensions = array<i32: 0>} : vector<4x256xi32>
    %cst_10 = arith.constant dense<0xFF800000> : vector<256xf32>
    %20 = vector.multi_reduction <maximumf>, %5, %cst_10 [0] : vector<4x256xf32> to vector<256xf32>
    %21 = vector.shape_cast %20 : vector<256xf32> to vector<1x256xf32>
    %22 = vector.broadcast %21 : vector<1x256xf32> to vector<4x256xf32>
    %23 = arith.cmpf oeq, %5, %22 : vector<4x256xf32>
    %c4_i32_11 = arith.constant 4 : i32
    %24 = vector.broadcast %c4_i32_11 : i32 to vector<4x256xi32>
    %25 = arith.select %23, %19, %24 : vector<4x256xi1>, vector<4x256xi32>
    %cst_12 = arith.constant dense<2147483647> : vector<256xi32>
    %26 = vector.multi_reduction <minsi>, %25, %cst_12 [0] : vector<4x256xi32> to vector<256xi32>
    %27 = vector.shape_cast %26 : vector<256xi32> to vector<1x256xi32>
    %28 = vector.broadcast %27 : vector<1x256xi32> to vector<4x256xi32>
    %29 = arith.cmpi eq, %19, %28 : vector<4x256xi32>
    %30 = arith.extui %29 : vector<4x256xi1> to vector<4x256xi32>
    %31 = arith.sitofp %30 : vector<4x256xi32> to vector<4x256xf32>
    %cst_13 = arith.constant dense<0.000000e+00> : vector<4x4xf32>
    %32 = tpu.matmul %31, %18, %cst_13 {dimension_numbers = #tpu.dot_dimension_numbers<[1], [1], [0], [0], [0, 0, 1, 0], [], []>} : vector<4x256xf32>, vector<4x256xf32>, vector<4x4xf32> -> vector<4x4xf32>
    %cst_14 = arith.constant 0.000000e+00 : f32
    %33 = vector.broadcast %cst_14 : f32 to vector<4x4xf32>
    %34 = arith.subf %33, %32 : vector<4x4xf32>
    %35 = vector.shape_cast %34 : vector<4x4xf32> to vector<1x4x4xf32>
    %36 = vector.broadcast %35 : vector<1x4x4xf32> to vector<24x4x4xf32>
    %37 = arith.mulf %36, %0 : vector<24x4x4xf32>
    %cst_15 = arith.constant dense<0.000000e+00> : vector<24x4xf32>
    %38 = vector.multi_reduction <add>, %37, %cst_15 [2] : vector<24x4x4xf32> to vector<24x4xf32>
    %cst_16 = arith.constant dense<0.000000e+00> : vector<24xf32>
    %39 = vector.multi_reduction <add>, %38, %cst_16 [1] : vector<24x4xf32> to vector<24xf32>
    %40 = vector.shape_cast %39 : vector<24xf32> to vector<24x1xf32>
    %41 = tpu.iota {dimensions = array<i32: 0>} : vector<24x1xi32>
    %cst_17 = arith.constant dense<0x7F800000> : vector<1xf32>
    %42 = vector.multi_reduction <minimumf>, %40, %cst_17 [0] : vector<24x1xf32> to vector<1xf32>
    %43 = vector.shape_cast %42 : vector<1xf32> to vector<1x1xf32>
    %44 = vector.broadcast %43 : vector<1x1xf32> to vector<24x1xf32>
    %45 = arith.cmpf oeq, %40, %44 : vector<24x1xf32>
    %c24_i32 = arith.constant 24 : i32
    %46 = vector.broadcast %c24_i32 : i32 to vector<24x1xi32>
    %47 = arith.select %45, %41, %46 : vector<24x1xi1>, vector<24x1xi32>
    %cst_18 = arith.constant dense<2147483647> : vector<1xi32>
    %48 = vector.multi_reduction <minsi>, %47, %cst_18 [0] : vector<24x1xi32> to vector<1xi32>
    %49 = vector.shape_cast %48 : vector<1xi32> to vector<1x1xi32>
    %50 = vector.broadcast %49 : vector<1x1xi32> to vector<24x1xi32>
    %51 = arith.cmpi eq, %41, %50 : vector<24x1xi32>
    %52 = arith.extui %51 : vector<24x1xi1> to vector<24x1xi32>
    %53 = arith.sitofp %52 : vector<24x1xi32> to vector<24x1xf32>
    %54 = vector.shape_cast %53 : vector<24x1xf32> to vector<24x1x1xf32>
    %55 = vector.broadcast %54 : vector<24x1x1xf32> to vector<24x4x4xf32>
    %56 = arith.mulf %55, %0 : vector<24x4x4xf32>
    %cst_19 = arith.constant dense<0.000000e+00> : vector<4x4xf32>
    %57 = vector.multi_reduction <add>, %56, %cst_19 [0] : vector<24x4x4xf32> to vector<4x4xf32>
    %cst_20 = arith.constant dense<0.000000e+00> : vector<4x256xf32>
    %58 = tpu.matmul %57, %3, %cst_20 {dimension_numbers = #tpu.dot_dimension_numbers<[1], [0], [0], [1], [0, 0, 1, 1], [], []>} : vector<4x4xf32>, vector<4x256xf32>, vector<4x256xf32> -> vector<4x256xf32>
    %cst_21 = arith.constant dense<0xFF800000> : vector<256xf32>
    %59 = vector.multi_reduction <maximumf>, %58, %cst_21 [0] : vector<4x256xf32> to vector<256xf32>
    %60 = vector.shape_cast %59 : vector<256xf32> to vector<1x256xf32>
    %61 = vector.broadcast %60 : vector<1x256xf32> to vector<4x256xf32>
    %62 = arith.subf %58, %61 : vector<4x256xf32>
    %63 = math.exp %62 : vector<4x256xf32>
    %cst_22 = arith.constant dense<0.000000e+00> : vector<256xf32>
    %64 = vector.multi_reduction <add>, %63, %cst_22 [0] : vector<4x256xf32> to vector<256xf32>
    %65 = vector.shape_cast %64 : vector<256xf32> to vector<1x256xf32>
    %66 = math.log %65 : vector<1x256xf32>
    %67 = arith.addf %66, %60 : vector<1x256xf32>
    %68 = vector.broadcast %67 : vector<1x256xf32> to vector<4x256xf32>
    %69 = arith.subf %68, %58 : vector<4x256xf32>
    %70 = arith.mulf %5, %69 : vector<4x256xf32>
    %71 = vector.shape_cast %70 : vector<4x256xf32> to vector<1x4x256xf32>
    %cst_23 = arith.constant dense<0.000000e+00> : vector<1xf32>
    %72 = vector.multi_reduction <add>, %71, %cst_23 [1, 2] : vector<1x4x256xf32> to vector<1xf32>
    %73 = vector.shape_cast %72 : vector<1xf32> to vector<1x1x1xf32>
    %74 = vector.extract %73[0, 0, 0] : f32 from vector<1x1x1xf32>
    %75 = vector.broadcast %74 : f32 to vector<1x1xf32>
    %76 = arith.addf %1, %75 : vector<1x1xf32>
    %c1 = arith.constant 1 : index
    %c0_24 = arith.constant 0 : index
    %c0_25 = arith.constant 0 : index
    %77 = vector.load %arg0[%c1, %c0_24, %c0_25] : memref<2x4x256xf32, #tpu.memory_space<vmem>>, vector<1x4x256xf32>
    %78 = vector.shape_cast %77 : vector<1x4x256xf32> to vector<4x256xf32>
    %c1_26 = arith.constant 1 : index
    %c0_27 = arith.constant 0 : index
    %c0_28 = arith.constant 0 : index
    %79 = vector.load %arg1[%c1_26, %c0_27, %c0_28] : memref<2x4x256xf32, #tpu.memory_space<vmem>>, vector<1x4x256xf32>
    %80 = vector.shape_cast %79 : vector<1x4x256xf32> to vector<4x256xf32>
    %81 = tpu.iota {dimensions = array<i32: 0>} : vector<4x256xi32>
    %cst_29 = arith.constant dense<0xFF800000> : vector<256xf32>
    %82 = vector.multi_reduction <maximumf>, %78, %cst_29 [0] : vector<4x256xf32> to vector<256xf32>
    %83 = vector.shape_cast %82 : vector<256xf32> to vector<1x256xf32>
    %84 = vector.broadcast %83 : vector<1x256xf32> to vector<4x256xf32>
    %85 = arith.cmpf oeq, %78, %84 : vector<4x256xf32>
    %c4_i32_30 = arith.constant 4 : i32
    %86 = vector.broadcast %c4_i32_30 : i32 to vector<4x256xi32>
    %87 = arith.select %85, %81, %86 : vector<4x256xi1>, vector<4x256xi32>
    %cst_31 = arith.constant dense<2147483647> : vector<256xi32>
    %88 = vector.multi_reduction <minsi>, %87, %cst_31 [0] : vector<4x256xi32> to vector<256xi32>
    %89 = vector.shape_cast %88 : vector<256xi32> to vector<1x256xi32>
    %90 = vector.broadcast %89 : vector<1x256xi32> to vector<4x256xi32>
    %91 = arith.cmpi eq, %81, %90 : vector<4x256xi32>
    %92 = arith.extui %91 : vector<4x256xi1> to vector<4x256xi32>
    %93 = arith.sitofp %92 : vector<4x256xi32> to vector<4x256xf32>
    %94 = tpu.iota {dimensions = array<i32: 0>} : vector<4x256xi32>
    %cst_32 = arith.constant dense<0xFF800000> : vector<256xf32>
    %95 = vector.multi_reduction <maximumf>, %80, %cst_32 [0] : vector<4x256xf32> to vector<256xf32>
    %96 = vector.shape_cast %95 : vector<256xf32> to vector<1x256xf32>
    %97 = vector.broadcast %96 : vector<1x256xf32> to vector<4x256xf32>
    %98 = arith.cmpf oeq, %80, %97 : vector<4x256xf32>
    %c4_i32_33 = arith.constant 4 : i32
    %99 = vector.broadcast %c4_i32_33 : i32 to vector<4x256xi32>
    %100 = arith.select %98, %94, %99 : vector<4x256xi1>, vector<4x256xi32>
    %cst_34 = arith.constant dense<2147483647> : vector<256xi32>
    %101 = vector.multi_reduction <minsi>, %100, %cst_34 [0] : vector<4x256xi32> to vector<256xi32>
    %102 = vector.shape_cast %101 : vector<256xi32> to vector<1x256xi32>
    %103 = vector.broadcast %102 : vector<1x256xi32> to vector<4x256xi32>
    %104 = arith.cmpi eq, %94, %103 : vector<4x256xi32>
    %105 = arith.extui %104 : vector<4x256xi1> to vector<4x256xi32>
    %106 = arith.sitofp %105 : vector<4x256xi32> to vector<4x256xf32>
    %cst_35 = arith.constant dense<0.000000e+00> : vector<4x4xf32>
    %107 = tpu.matmul %106, %93, %cst_35 {dimension_numbers = #tpu.dot_dimension_numbers<[1], [1], [0], [0], [0, 0, 1, 0], [], []>} : vector<4x256xf32>, vector<4x256xf32>, vector<4x4xf32> -> vector<4x4xf32>
    %cst_36 = arith.constant 0.000000e+00 : f32
    %108 = vector.broadcast %cst_36 : f32 to vector<4x4xf32>
    %109 = arith.subf %108, %107 : vector<4x4xf32>
    %110 = vector.shape_cast %109 : vector<4x4xf32> to vector<1x4x4xf32>
    %111 = vector.broadcast %110 : vector<1x4x4xf32> to vector<24x4x4xf32>
    %112 = arith.mulf %111, %0 : vector<24x4x4xf32>
    %cst_37 = arith.constant dense<0.000000e+00> : vector<24x4xf32>
    %113 = vector.multi_reduction <add>, %112, %cst_37 [2] : vector<24x4x4xf32> to vector<24x4xf32>
    %cst_38 = arith.constant dense<0.000000e+00> : vector<24xf32>
    %114 = vector.multi_reduction <add>, %113, %cst_38 [1] : vector<24x4xf32> to vector<24xf32>
    %115 = vector.shape_cast %114 : vector<24xf32> to vector<24x1xf32>
    %116 = tpu.iota {dimensions = array<i32: 0>} : vector<24x1xi32>
    %cst_39 = arith.constant dense<0x7F800000> : vector<1xf32>
    %117 = vector.multi_reduction <minimumf>, %115, %cst_39 [0] : vector<24x1xf32> to vector<1xf32>
    %118 = vector.shape_cast %117 : vector<1xf32> to vector<1x1xf32>
    %119 = vector.broadcast %118 : vector<1x1xf32> to vector<24x1xf32>
    %120 = arith.cmpf oeq, %115, %119 : vector<24x1xf32>
    %c24_i32_40 = arith.constant 24 : i32
    %121 = vector.broadcast %c24_i32_40 : i32 to vector<24x1xi32>
    %122 = arith.select %120, %116, %121 : vector<24x1xi1>, vector<24x1xi32>
    %cst_41 = arith.constant dense<2147483647> : vector<1xi32>
    %123 = vector.multi_reduction <minsi>, %122, %cst_41 [0] : vector<24x1xi32> to vector<1xi32>
    %124 = vector.shape_cast %123 : vector<1xi32> to vector<1x1xi32>
    %125 = vector.broadcast %124 : vector<1x1xi32> to vector<24x1xi32>
    %126 = arith.cmpi eq, %116, %125 : vector<24x1xi32>
    %127 = arith.extui %126 : vector<24x1xi1> to vector<24x1xi32>
    %128 = arith.sitofp %127 : vector<24x1xi32> to vector<24x1xf32>
    %129 = vector.shape_cast %128 : vector<24x1xf32> to vector<24x1x1xf32>
    %130 = vector.broadcast %129 : vector<24x1x1xf32> to vector<24x4x4xf32>
    %131 = arith.mulf %130, %0 : vector<24x4x4xf32>
    %cst_42 = arith.constant dense<0.000000e+00> : vector<4x4xf32>
    %132 = vector.multi_reduction <add>, %131, %cst_42 [0] : vector<24x4x4xf32> to vector<4x4xf32>
    %cst_43 = arith.constant dense<0.000000e+00> : vector<4x256xf32>
    %133 = tpu.matmul %132, %78, %cst_43 {dimension_numbers = #tpu.dot_dimension_numbers<[1], [0], [0], [1], [0, 0, 1, 1], [], []>} : vector<4x4xf32>, vector<4x256xf32>, vector<4x256xf32> -> vector<4x256xf32>
    %cst_44 = arith.constant dense<0xFF800000> : vector<256xf32>
    %134 = vector.multi_reduction <maximumf>, %133, %cst_44 [0] : vector<4x256xf32> to vector<256xf32>
    %135 = vector.shape_cast %134 : vector<256xf32> to vector<1x256xf32>
    %136 = vector.broadcast %135 : vector<1x256xf32> to vector<4x256xf32>
    %137 = arith.subf %133, %136 : vector<4x256xf32>
    %138 = math.exp %137 : vector<4x256xf32>
    %cst_45 = arith.constant dense<0.000000e+00> : vector<256xf32>
    %139 = vector.multi_reduction <add>, %138, %cst_45 [0] : vector<4x256xf32> to vector<256xf32>
    %140 = vector.shape_cast %139 : vector<256xf32> to vector<1x256xf32>
    %141 = math.log %140 : vector<1x256xf32>
    %142 = arith.addf %141, %135 : vector<1x256xf32>
    %143 = vector.broadcast %142 : vector<1x256xf32> to vector<4x256xf32>
    %144 = arith.subf %143, %133 : vector<4x256xf32>
    %145 = arith.mulf %80, %144 : vector<4x256xf32>
    %146 = vector.shape_cast %145 : vector<4x256xf32> to vector<1x4x256xf32>
    %cst_46 = arith.constant dense<0.000000e+00> : vector<1xf32>
    %147 = vector.multi_reduction <add>, %146, %cst_46 [1, 2] : vector<1x4x256xf32> to vector<1xf32>
    %148 = vector.shape_cast %147 : vector<1xf32> to vector<1x1x1xf32>
    %149 = vector.extract %148[0, 0, 0] : f32 from vector<1x1x1xf32>
    %150 = vector.broadcast %149 : f32 to vector<1x1xf32>
    %151 = arith.addf %76, %150 : vector<1x1xf32>
    %c0_47 = arith.constant 0 : index
    %c0_48 = arith.constant 0 : index
    %152 = vector.load %arg3[%c0_47, %c0_48] : memref<1x1xf32, #tpu.memory_space<vmem>>, vector<1x1xf32>
    tpu.vector_store %arg3[%c0_47, %c0_48], %151 {strides = array<i32>} : memref<1x1xf32, #tpu.memory_space<vmem>>, vector<1x1xf32>,
    return
  }
}

</mosaic_0001>

<llo_original>
// kernel: consistency_loss.1
$region0: #{consistency_loss.1}
  #allocation0 [shape = 'u32[]', space=smem, size = 0x4, offset = 0x4, fixed_abs, tag = 'smem constant byte address 0x4 - core index']
  #allocation1 [shape = 'u32[72,128]{1,0:T(1,128)}', space=vmem, size = 0x9000, scoped, tag = 'internal scratch']
  %s0 = inlined_call_operand.vmem [shape: f32[2,4,256], index: 0, kind: input, shape index: {}]
  %s1 = inlined_call_operand.vmem [shape: f32[2,4,256], index: 1, kind: input, shape index: {}]
  %s2 = inlined_call_operand.vmem [shape: f32[24,4,4], index: 2, kind: input, shape index: {}]
  %s3 = inlined_call_operand.hbm [shape: f32[1,1], index: 3, kind: output, shape index: {}]
  %s4 = sld [smem:[#allocation0]]
  $region22: #{consistency_loss.1} parent=0
    _
  %s6 = ssub.s32 1, %s4
  %s7 = scalar_select 0, %s6, %s4
  $region1: #{consistency_loss.1} parent=0
    #allocation2 [shape = 'u8[512]{0}', space=vmem, size = 0x400, scoped, tag = 'output window, operand 0, single buffered']
    #allocation3 [shape = 's32[1]{0}', space=sflag, size = 0x4, scoped, tag = 'scoped memory for consistency_loss.1']
    %8 = vsyncpa [#allocation3], 0
    // Predicated region
    $region2: #{consistency_loss.1} parent=1 // pred_check
      _
    $region3: #{consistency_loss.1} parent=1 // pred_check_branch
      %10 = sbr.rel (0) target = $region5
    $region4: #{consistency_loss.1} parent=1 // pred_region
      _
    $region5: #{consistency_loss.1} parent=1 // pred_fallthru
      _
    // Predicated region
    $region6: #{consistency_loss.1} parent=1 // pred_check
      _
    $region7: #{consistency_loss.1} parent=1 // pred_check_branch
      %12 = sbr.rel (0) target = $region9
    $region8: #{consistency_loss.1} parent=1 // pred_region
      _
    $region9: #{consistency_loss.1} parent=1 // pred_fallthru
      _
    // Predicated region
    $region10: #{consistency_loss.1} parent=1 // pred_check
      _
    $region11: #{consistency_loss.1} parent=1 // pred_check_branch
      %14 = sbr.rel (0) target = $region13
    $region12: #{consistency_loss.1} parent=1 // pred_region
      _
    $region13: #{consistency_loss.1} parent=1 // pred_fallthru
      _
    %v15 = vld [vmem:[%s2] sm:$0xf]
    %v16 = vld [vmem:[%s2 + $0x4] sm:$0xf]
    %v17 = vld [vmem:[%s2 + $0x8] sm:$0xf]
    %v18 = vld [vmem:[%s2 + $0xc] sm:$0xf]
    %v19 = vld [vmem:[%s2 + $0x10] sm:$0xf]
    %v20 = vld [vmem:[%s2 + $0x14] sm:$0xf]
    %v21 = vld [vmem:[%s2 + $0x18] sm:$0xf]
    %v22 = vld [vmem:[%s2 + $0x1c] sm:$0xf]
    %v23 = vld [vmem:[%s2 + $0x20] sm:$0xf]
    %v24 = vld [vmem:[%s2 + $0x24] sm:$0xf]
    %v25 = vld [vmem:[%s2 + $0x28] sm:$0xf]
    %v26 = vld [vmem:[%s2 + $0x2c] sm:$0xf]
    %v27 = vld [vmem:[%s2 + $0x30] sm:$0xf]
    %v28 = vld [vmem:[%s2 + $0x34] sm:$0xf]
    %v29 = vld [vmem:[%s2 + $0x38] sm:$0xf]
    %v30 = vld [vmem:[%s2 + $0x3c] sm:$0xf]
    %v31 = vld [vmem:[%s2 + $0x40] sm:$0xf]
    %v32 = vld [vmem:[%s2 + $0x44] sm:$0xf]
    %v33 = vld [vmem:[%s2 + $0x48] sm:$0xf]
    %v34 = vld [vmem:[%s2 + $0x4c] sm:$0xf]
    %v35 = vld [vmem:[%s2 + $0x50] sm:$0xf]
    %v36 = vld [vmem:[%s2 + $0x54] sm:$0xf]
    %v37 = vld [vmem:[%s2 + $0x58] sm:$0xf]
    %v38 = vld [vmem:[%s2 + $0x5c] sm:$0xf]
    %v39 = vld [vmem:[%s0] sm:$0xff]
    %v40 = vld [vmem:[%s1] sm:$0xff]
    %v41 = vlaneseq
    %v42 = vshrl.u32 %v41, 7
    %44 = vst [vmem:[#allocation1] ss:$2 sm:$0xff] %v39
    %v45 = vld.sshfl [vmem:[#allocation1] sm:$0xff pattern:$0x75316420]
    %v46 = vld.sshfl [vmem:[#allocation1 + $0x8] sm:$0xff pattern:$0x75316420]
    %vm49 = vcmask 1043456
    %v50 = vsel %vm49, %v45, -inf
    %v51 = vrot.slane %v50, 4
    %v52 = vmax.f32 %v50, %v51
    %v53 = vrot.slane %v52, 2
    %v54 = vmax.f32 %v52, %v53
    %v55 = vrot.slane %v54, 1
    %v56 = vmax.f32 %v54, %v55
    %v57 = vsel %vm49, %v46, -inf
    %v58 = vrot.slane %v57, 4
    %v59 = vmax.f32 %v57, %v58
    %v60 = vrot.slane %v59, 2
    %v61 = vmax.f32 %v59, %v60
    %v62 = vrot.slane %v61, 1
    %v63 = vmax.f32 %v61, %v62
    %v66 = vrot.slane %v63, 4
    %v67 = vsel %vm49, %v56, %v66
    %vm69 = vcmp.eq.f32.partialorder %v39, %v67
    %v71 = vunpack.c.l.s4 839922192
    %v72 = vunpack.c.0.s8 %v71
    %v73 = vperm.slane %v42, %v72
    %v74 = vsel %vm69, %v73, 4
    %75 = vst [vmem:[#allocation1] ss:$2 sm:$0xff] %v74
    %v76 = vld.sshfl [vmem:[#allocation1] sm:$0xff pattern:$0x75316420]
    %v77 = vld.sshfl [vmem:[#allocation1 + $0x8] sm:$0xff pattern:$0x75316420]
    %v78 = vsel %vm49, %v76, 2147483647
    %v79 = vrot.slane %v78, 4
    %vm80 = vcmp.lt.s32.totalorder %v78, %v79
    %v81 = vsel %vm80, %v78, %v79
    %v82 = vrot.slane %v81, 2
    %vm83 = vcmp.lt.s32.totalorder %v81, %v82
    %v84 = vsel %vm83, %v81, %v82
    %v85 = vrot.slane %v84, 1
    %vm86 = vcmp.lt.s32.totalorder %v84, %v85
    %v87 = vsel %vm86, %v84, %v85
    %v88 = vsel %vm49, %v77, 2147483647
    %v89 = vrot.slane %v88, 4
    %vm90 = vcmp.lt.s32.totalorder %v88, %v89
    %v91 = vsel %vm90, %v88, %v89
    %v92 = vrot.slane %v91, 2
    %vm93 = vcmp.lt.s32.totalorder %v91, %v92
    %v94 = vsel %vm93, %v91, %v92
    %v95 = vrot.slane %v94, 1
    %vm96 = vcmp.lt.s32.totalorder %v94, %v95
    %v97 = vsel %vm96, %v94, %v95
    %vm98 = vcmp.eq.s32.totalorder %v42, %v87
    %vm99 = vcmp.eq.s32.totalorder %v42, %v97
    %v100 = vsel %vm98, 1, 0
    %v101 = vsel %vm99, 1, 0
    %v102 = vcvt.s32.f32 %v100
    %v103 = vcvt.s32.f32 %v101
    %105 = vst [vmem:[#allocation1] ss:$2 sm:$0xff] %v40
    %v106 = vld.sshfl [vmem:[#allocation1] sm:$0xff pattern:$0x75316420]
    %v107 = vld.sshfl [vmem:[#allocation1 + $0x8] sm:$0xff pattern:$0x75316420]
    %v110 = vsel %vm49, %v106, -inf
    %v111 = vrot.slane %v110, 4
    %v112 = vmax.f32 %v110, %v111
    %v113 = vrot.slane %v112, 2
    %v114 = vmax.f32 %v112, %v113
    %v115 = vrot.slane %v114, 1
    %v116 = vmax.f32 %v114, %v115
    %v117 = vsel %vm49, %v107, -inf
    %v118 = vrot.slane %v117, 4
    %v119 = vmax.f32 %v117, %v118
    %v120 = vrot.slane %v119, 2
    %v121 = vmax.f32 %v119, %v120
    %v122 = vrot.slane %v121, 1
    %v123 = vmax.f32 %v121, %v122
    %v126 = vrot.slane %v123, 4
    %v127 = vsel %vm49, %v116, %v126
    %vm129 = vcmp.eq.f32.partialorder %v40, %v127
    %v130 = vsel %vm129, %v73, 4
    %131 = vst [vmem:[#allocation1] ss:$2 sm:$0xff] %v130
    %v132 = vld.sshfl [vmem:[#allocation1] sm:$0xff pattern:$0x75316420]
    %v133 = vld.sshfl [vmem:[#allocation1 + $0x8] sm:$0xff pattern:$0x75316420]
    %v134 = vsel %vm49, %v132, 2147483647
    %v135 = vrot.slane %v134, 4
    %vm136 = vcmp.lt.s32.totalorder %v134, %v135
    %v137 = vsel %vm136, %v134, %v135
    %v138 = vrot.slane %v137, 2
    %vm139 = vcmp.lt.s32.totalorder %v137, %v138
    %v140 = vsel %vm139, %v137, %v138
    %v141 = vrot.slane %v140, 1
    %vm142 = vcmp.lt.s32.totalorder %v140, %v141
    %v143 = vsel %vm142, %v140, %v141
    %v144 = vsel %vm49, %v133, 2147483647
    %v145 = vrot.slane %v144, 4
    %vm146 = vcmp.lt.s32.totalorder %v144, %v145
    %v147 = vsel %vm146, %v144, %v145
    %v148 = vrot.slane %v147, 2
    %vm149 = vcmp.lt.s32.totalorder %v147, %v148
    %v150 = vsel %vm149, %v147, %v148
    %v151 = vrot.slane %v150, 1
    %vm152 = vcmp.lt.s32.totalorder %v150, %v151
    %v153 = vsel %vm152, %v150, %v151
    %vm154 = vcmp.eq.s32.totalorder %v42, %v143
    %vm155 = vcmp.eq.s32.totalorder %v42, %v153
    %v156 = vsel %vm154, 1, 0
    %v157 = vsel %vm155, 1, 0
    %v158 = vcvt.s32.f32 %v156
    %v159 = vcvt.s32.f32 %v157
    %160 = vmatpush.xpose.msra.mxu0 0.0
    %161 = vmatpush.xpose.msra.mxu0 0.0
    %162 = vmatpush.xpose.msra.mxu0 0.0
    %163 = vmatpush.xpose.msra.mxu0 0.0
    %164 = vmatpush.xpose.msra.mxu0 0.0
    %165 = vmatpush.xpose.msra.mxu0 0.0
    %166 = vmatpush.xpose.msra.mxu0 0.0
    %167 = vmatpush.xpose.msra.mxu0 0.0
    %168 = vmatpush.xpose.msra.mxu0 0.0
    %169 = vmatpush.xpose.msra.mxu0 0.0
    %170 = vmatpush.xpose.msra.mxu0 0.0
    %171 = vmatpush.xpose.msra.mxu0 0.0
    %172 = vmatpush.xpose.msra.mxu0 0.0
    %173 = vmatpush.xpose.msra.mxu0 0.0
    %174 = vmatpush.xpose.msra.mxu0 0.0
    %175 = vmatpush.xpose.msra.mxu0 %v102
    %176 = vmatmul.f32.gmra.mxu0 %v158
    %v177 = vpop.f32.mrf.mxu0
    %v178 = vadd.f32 0.0, %v177
    %179 = vdwg.mxu0
    %180 = vmatpush.xpose.msra.mxu0 0.0
    %181 = vmatpush.xpose.msra.mxu0 0.0
    %182 = vmatpush.xpose.msra.mxu0 0.0
    %183 = vmatpush.xpose.msra.mxu0 0.0
    %184 = vmatpush.xpose.msra.mxu0 0.0
    %185 = vmatpush.xpose.msra.mxu0 0.0
    %186 = vmatpush.xpose.msra.mxu0 0.0
    %187 = vmatpush.xpose.msra.mxu0 0.0
    %188 = vmatpush.xpose.msra.mxu0 0.0
    %189 = vmatpush.xpose.msra.mxu0 0.0
    %190 = vmatpush.xpose.msra.mxu0 0.0
    %191 = vmatpush.xpose.msra.mxu0 0.0
    %192 = vmatpush.xpose.msra.mxu0 0.0
    %193 = vmatpush.xpose.msra.mxu0 0.0
    %194 = vmatpush.xpose.msra.mxu0 0.0
    %195 = vmatpush.xpose.msra.mxu0 %v103
    %196 = vmatmul.f32.gmra.mxu0 %v159
    %v197 = vpop.f32.mrf.mxu0
    %v198 = vadd.f32 %v178, %v197
    %199 = vdwg.mxu0
    %v200 = vsub.f32 0.0, %v198
    %v201 = vmul.f32 %v200, %v15
    %v202 = vmul.f32 %v200, %v16
    %v203 = vmul.f32 %v200, %v17
    %v204 = vmul.f32 %v200, %v18
    %v205 = vmul.f32 %v200, %v19
    %v206 = vmul.f32 %v200, %v20
    %v207 = vmul.f32 %v200, %v21
    %v208 = vmul.f32 %v200, %v22
    %v209 = vmul.f32 %v200, %v23
    %v210 = vmul.f32 %v200, %v24
    %v211 = vmul.f32 %v200, %v25
    %v212 = vmul.f32 %v200, %v26
    %v213 = vmul.f32 %v200, %v27
    %v214 = vmul.f32 %v200, %v28
    %v215 = vmul.f32 %v200, %v29
    %v216 = vmul.f32 %v200, %v30
    %v217 = vmul.f32 %v200, %v31
    %v218 = vmul.f32 %v200, %v32
    %v219 = vmul.f32 %v200, %v33
    %v220 = vmul.f32 %v200, %v34
    %v221 = vmul.f32 %v200, %v35
    %v222 = vmul.f32 %v200, %v36
    %v223 = vmul.f32 %v200, %v37
    %v224 = vmul.f32 %v200, %v38
    %vm225 = vcmask 27648
    %v226 = vsel %vm225, %v201, 0.0
    %227 = vadd.xlane.f32.xlu0 %v226
    %v228 = vpop.xlane.xlu0 %227
    %v229 = vsel %vm225, %v202, 0.0
    %230 = vadd.xlane.f32.xlu0 %v229
    %v231 = vpop.xlane.xlu0 %230
    %v232 = vsel %vm225, %v203, 0.0
    %233 = vadd.xlane.f32.xlu0 %v232
    %v234 = vpop.xlane.xlu0 %233
    %v235 = vsel %vm225, %v204, 0.0
    %236 = vadd.xlane.f32.xlu0 %v235
    %v237 = vpop.xlane.xlu0 %236
    %v238 = vsel %vm225, %v205, 0.0
    %239 = vadd.xlane.f32.xlu0 %v238
    %v240 = vpop.xlane.xlu0 %239
    %v241 = vsel %vm225, %v206, 0.0
    %242 = vadd.xlane.f32.xlu0 %v241
    %v243 = vpop.xlane.xlu0 %242
    %v244 = vsel %vm225, %v207, 0.0
    %245 = vadd.xlane.f32.xlu0 %v244
    %v246 = vpop.xlane.xlu0 %245
    %v247 = vsel %vm225, %v208, 0.0
    %248 = vadd.xlane.f32.xlu0 %v247
    %v249 = vpop.xlane.xlu0 %248
    %v250 = vsel %vm225, %v209, 0.0
    %251 = vadd.xlane.f32.xlu0 %v250
    %v252 = vpop.xlane.xlu0 %251
    %v253 = vsel %vm225, %v210, 0.0
    %254 = vadd.xlane.f32.xlu0 %v253
    %v255 = vpop.xlane.xlu0 %254
    %v256 = vsel %vm225, %v211, 0.0
    %257 = vadd.xlane.f32.xlu0 %v256
    %v258 = vpop.xlane.xlu0 %257
    %v259 = vsel %vm225, %v212, 0.0
    %260 = vadd.xlane.f32.xlu0 %v259
    %v261 = vpop.xlane.xlu0 %260
    %v262 = vsel %vm225, %v213, 0.0
    %263 = vadd.xlane.f32.xlu0 %v262
    %v264 = vpop.xlane.xlu0 %263
    %v265 = vsel %vm225, %v214, 0.0
    %266 = vadd.xlane.f32.xlu0 %v265
    %v267 = vpop.xlane.xlu0 %266
    %v268 = vsel %vm225, %v215, 0.0
    %269 = vadd.xlane.f32.xlu0 %v268
    %v270 = vpop.xlane.xlu0 %269
    %v271 = vsel %vm225, %v216, 0.0
    %272 = vadd.xlane.f32.xlu0 %v271
    %v273 = vpop.xlane.xlu0 %272
    %v274 = vsel %vm225, %v217, 0.0
    %275 = vadd.xlane.f32.xlu0 %v274
    %v276 = vpop.xlane.xlu0 %275
    %v277 = vsel %vm225, %v218, 0.0
    %278 = vadd.xlane.f32.xlu0 %v277
    %v279 = vpop.xlane.xlu0 %278
    %v280 = vsel %vm225, %v219, 0.0
    %281 = vadd.xlane.f32.xlu0 %v280
    %v282 = vpop.xlane.xlu0 %281
    %v283 = vsel %vm225, %v220, 0.0
    %284 = vadd.xlane.f32.xlu0 %v283
    %v285 = vpop.xlane.xlu0 %284
    %v286 = vsel %vm225, %v221, 0.0
    %287 = vadd.xlane.f32.xlu0 %v286
    %v288 = vpop.xlane.xlu0 %287
    %v289 = vsel %vm225, %v222, 0.0
    %290 = vadd.xlane.f32.xlu0 %v289
    %v291 = vpop.xlane.xlu0 %290
    %v292 = vsel %vm225, %v223, 0.0
    %293 = vadd.xlane.f32.xlu0 %v292
    %v294 = vpop.xlane.xlu0 %293
    %v295 = vsel %vm225, %v224, 0.0
    %296 = vadd.xlane.f32.xlu0 %v295
    %v297 = vpop.xlane.xlu0 %296
    %v322 = vlaneseq
    %v323 = vand.u32 %v322, 127
    %v324 = vperm.slane %v228, %v323
    %v325 = vperm.slane %v231, %v323
    %v326 = vperm.slane %v234, %v323
    %v327 = vperm.slane %v237, %v323
    %v328 = vperm.slane %v240, %v323
    %v329 = vperm.slane %v243, %v323
    %v330 = vperm.slane %v246, %v323
    %v331 = vperm.slane %v249, %v323
    %v332 = vperm.slane %v252, %v323
    %v333 = vperm.slane %v255, %v323
    %v334 = vperm.slane %v258, %v323
    %v335 = vperm.slane %v261, %v323
    %v336 = vperm.slane %v264, %v323
    %v337 = vperm.slane %v267, %v323
    %v338 = vperm.slane %v270, %v323
    %v339 = vperm.slane %v273, %v323
    %v340 = vperm.slane %v276, %v323
    %v341 = vperm.slane %v279, %v323
    %v342 = vperm.slane %v282, %v323
    %v343 = vperm.slane %v285, %v323
    %v344 = vperm.slane %v288, %v323
    %v345 = vperm.slane %v291, %v323
    %v346 = vperm.slane %v294, %v323
    %v347 = vperm.slane %v297, %v323
    %vm348 = vcmask 1041409
    %v349 = vsel %vm348, %v325, %v324
    %vm350 = vcmask 1042434
    %v351 = vsel %vm350, %v326, %v349
    %vm352 = vcmask 1043459
    %v353 = vsel %vm352, %v327, %v351
    %vm354 = vcmask 1044484
    %v355 = vsel %vm354, %v328, %v353
    %vm356 = vcmask 1045509
    %v357 = vsel %vm356, %v329, %v355
    %vm358 = vcmask 1046534
    %v359 = vsel %vm358, %v330, %v357
    %vm360 = vcmask 1047559
    %v361 = vsel %vm360, %v331, %v359
    %v362 = vsel %vm348, %v333, %v332
    %v363 = vsel %vm350, %v334, %v362
    %v364 = vsel %vm352, %v335, %v363
    %v365 = vsel %vm354, %v336, %v364
    %v366 = vsel %vm356, %v337, %v365
    %v367 = vsel %vm358, %v338, %v366
    %v368 = vsel %vm360, %v339, %v367
    %v369 = vsel %vm348, %v341, %v340
    %v370 = vsel %vm350, %v342, %v369
    %v371 = vsel %vm352, %v343, %v370
    %v372 = vsel %vm354, %v344, %v371
    %v373 = vsel %vm356, %v345, %v372
    %v374 = vsel %vm358, %v346, %v373
    %v375 = vsel %vm360, %v347, %v374
    %vm379 = vcmask 31744
    %v380 = vsel %vm379, %v361, 0.0
    %381 = vadd.xlane.f32.xlu0 %v380
    %v382 = vpop.xlane.xlu0 %381
    %v383 = vsel %vm379, %v368, 0.0
    %384 = vadd.xlane.f32.xlu0 %v383
    %v385 = vpop.xlane.xlu0 %384
    %v386 = vsel %vm379, %v375, 0.0
    %387 = vadd.xlane.f32.xlu0 %v386
    %v388 = vpop.xlane.xlu0 %387
    %v389 = vadd.s32 %v42, 8
    %v390 = vadd.s32 %v42, 16
    %v391 = vmin.f32 %v382, %v385
    %v392 = vmin.f32 %v391, %v388
    %v393 = vrot.slane %v392, 4
    %v394 = vmin.f32 %v392, %v393
    %v395 = vrot.slane %v394, 2
    %v396 = vmin.f32 %v394, %v395
    %v397 = vrot.slane %v396, 1
    %v398 = vmin.f32 %v396, %v397
    %vm399 = vcmp.eq.f32.partialorder %v382, %v398
    %vm400 = vcmp.eq.f32.partialorder %v385, %v398
    %vm401 = vcmp.eq.f32.partialorder %v388, %v398
    %v402 = vsel %vm399, %v42, 24
    %v403 = vsel %vm400, %v389, 24
    %v404 = vsel %vm401, %v390, 24
    %vm405 = vcmp.lt.s32.totalorder %v402, %v403
    %v406 = vsel %vm405, %v402, %v403
    %vm407 = vcmp.lt.s32.totalorder %v406, %v404
    %v408 = vsel %vm407, %v406, %v404
    %v409 = vrot.slane %v408, 4
    %vm410 = vcmp.lt.s32.totalorder %v408, %v409
    %v411 = vsel %vm410, %v408, %v409
    %v412 = vrot.slane %v411, 2
    %vm413 = vcmp.lt.s32.totalorder %v411, %v412
    %v414 = vsel %vm413, %v411, %v412
    %v415 = vrot.slane %v414, 1
    %vm416 = vcmp.lt.s32.totalorder %v414, %v415
    %v417 = vsel %vm416, %v414, %v415
    %vm418 = vcmp.eq.s32.totalorder %v42, %v417
    %vm419 = vcmp.eq.s32.totalorder %v389, %v417
    %vm420 = vcmp.eq.s32.totalorder %v390, %v417
    %v421 = vsel %vm418, 1, 0
    %v422 = vsel %vm419, 1, 0
    %v423 = vsel %vm420, 1, 0
    %v424 = vcvt.s32.f32 %v421
    %v425 = vcvt.s32.f32 %v422
    %v426 = vcvt.s32.f32 %v423
    %v430 = vperm.slane %v424, 0
    %v431 = vperm.slane %v424, 1
    %v432 = vperm.slane %v424, 2
    %v433 = vperm.slane %v424, 3
    %v434 = vperm.slane %v424, 4
    %v435 = vperm.slane %v424, 5
    %v436 = vperm.slane %v424, 6
    %v437 = vperm.slane %v424, 7
    %v438 = vperm.slane %v425, 0
    %v439 = vperm.slane %v425, 1
    %v440 = vperm.slane %v425, 2
    %v441 = vperm.slane %v425, 3
    %v442 = vperm.slane %v425, 4
    %v443 = vperm.slane %v425, 5
    %v444 = vperm.slane %v425, 6
    %v445 = vperm.slane %v425, 7
    %v446 = vperm.slane %v426, 0
    %v447 = vperm.slane %v426, 1
    %v448 = vperm.slane %v426, 2
    %v449 = vperm.slane %v426, 3
    %v450 = vperm.slane %v426, 4
    %v451 = vperm.slane %v426, 5
    %v452 = vperm.slane %v426, 6
    %v453 = vperm.slane %v426, 7
    %v478 = vmul.f32 %v430, %v15
    %v479 = vmul.f32 %v431, %v16
    %v480 = vmul.f32 %v432, %v17
    %v481 = vmul.f32 %v433, %v18
    %v482 = vmul.f32 %v434, %v19
    %v483 = vmul.f32 %v435, %v20
    %v484 = vmul.f32 %v436, %v21
    %v485 = vmul.f32 %v437, %v22
    %v486 = vmul.f32 %v438, %v23
    %v487 = vmul.f32 %v439, %v24
    %v488 = vmul.f32 %v440, %v25
    %v489 = vmul.f32 %v441, %v26
    %v490 = vmul.f32 %v442, %v27
    %v491 = vmul.f32 %v443, %v28
    %v492 = vmul.f32 %v444, %v29
    %v493 = vmul.f32 %v445, %v30
    %v494 = vmul.f32 %v446, %v31
    %v495 = vmul.f32 %v447, %v32
    %v496 = vmul.f32 %v448, %v33
    %v497 = vmul.f32 %v449, %v34
    %v498 = vmul.f32 %v450, %v35
    %v499 = vmul.f32 %v451, %v36
    %v500 = vmul.f32 %v452, %v37
    %v501 = vmul.f32 %v453, %v38
    %v502 = vsel %vm225, %v478, 0.0
    %v503 = vsel %vm225, %v479, 0.0
    %v504 = vadd.f32 %v502, %v503
    %v505 = vsel %vm225, %v480, 0.0
    %v506 = vadd.f32 %v504, %v505
    %v507 = vsel %vm225, %v481, 0.0
    %v508 = vadd.f32 %v506, %v507
    %v509 = vsel %vm225, %v482, 0.0
    %v510 = vadd.f32 %v508, %v509
    %v511 = vsel %vm225, %v483, 0.0
    %v512 = vadd.f32 %v510, %v511
    %v513 = vsel %vm225, %v484, 0.0
    %v514 = vadd.f32 %v512, %v513
    %v515 = vsel %vm225, %v485, 0.0
    %v516 = vadd.f32 %v514, %v515
    %v517 = vsel %vm225, %v486, 0.0
    %v518 = vadd.f32 %v516, %v517
    %v519 = vsel %vm225, %v487, 0.0
    %v520 = vadd.f32 %v518, %v519
    %v521 = vsel %vm225, %v488, 0.0
    %v522 = vadd.f32 %v520, %v521
    %v523 = vsel %vm225, %v489, 0.0
    %v524 = vadd.f32 %v522, %v523
    %v525 = vsel %vm225, %v490, 0.0
    %v526 = vadd.f32 %v524, %v525
    %v527 = vsel %vm225, %v491, 0.0
    %v528 = vadd.f32 %v526, %v527
    %v529 = vsel %vm225, %v492, 0.0
    %v530 = vadd.f32 %v528, %v529
    %v531 = vsel %vm225, %v493, 0.0
    %v532 = vadd.f32 %v530, %v531
    %v533 = vsel %vm225, %v494, 0.0
    %v534 = vadd.f32 %v532, %v533
    %v535 = vsel %vm225, %v495, 0.0
    %v536 = vadd.f32 %v534, %v535
    %v537 = vsel %vm225, %v496, 0.0
    %v538 = vadd.f32 %v536, %v537
    %v539 = vsel %vm225, %v497, 0.0
    %v540 = vadd.f32 %v538, %v539
    %v541 = vsel %vm225, %v498, 0.0
    %v542 = vadd.f32 %v540, %v541
    %v543 = vsel %vm225, %v499, 0.0
    %v544 = vadd.f32 %v542, %v543
    %v545 = vsel %vm225, %v500, 0.0
    %v546 = vadd.f32 %v544, %v545
    %v547 = vsel %vm225, %v501, 0.0
    %v548 = vadd.f32 %v546, %v547
    %549 = vst [vmem:[#allocation1] ss:$2 sm:$0xff] %v39
    %v550 = vld.sshfl [vmem:[#allocation1] sm:$0xff pattern:$0x75316420]
    %v551 = vld.sshfl [vmem:[#allocation1 + $0x8] sm:$0xff pattern:$0x75316420]
    %v553 = vsel %vm379, %v548, 0
    %v555 = vsel %vm49, %v550, 0
    %v557 = vsel %vm49, %v551, 0
    %559 = vmatpush.msra.mxu0 0.0
    %560 = vmatpush.msra.mxu0 0.0
    %561 = vmatpush.msra.mxu0 0.0
    %562 = vmatpush.msra.mxu0 0.0
    %563 = vmatpush.msra.mxu0 0.0
    %564 = vmatpush.msra.mxu0 0.0
    %565 = vmatpush.msra.mxu0 0.0
    %566 = vmatpush.msra.mxu0 0.0
    %567 = vmatpush.msra.mxu0 0.0
    %568 = vmatpush.msra.mxu0 0.0
    %569 = vmatpush.msra.mxu0 0.0
    %570 = vmatpush.msra.mxu0 0.0
    %571 = vmatpush.msra.mxu0 0.0
    %572 = vmatpush.msra.mxu0 0.0
    %573 = vmatpush.msra.mxu0 0.0
    %574 = vmatpush.msra.mxu0 %v555
    %575 = vmatmul.f32.gmra.mxu0 %v553
    %v576 = vpop.f32.mrf.mxu0
    %v577 = vadd.f32 0.0, %v576
    %578 = vdwg.mxu0
    %579 = vmatpush.msra.mxu0 0.0
    %580 = vmatpush.msra.mxu0 0.0
    %581 = vmatpush.msra.mxu0 0.0
    %582 = vmatpush.msra.mxu0 0.0
    %583 = vmatpush.msra.mxu0 0.0
    %584 = vmatpush.msra.mxu0 0.0
    %585 = vmatpush.msra.mxu0 0.0
    %586 = vmatpush.msra.mxu0 0.0
    %587 = vmatpush.msra.mxu0 0.0
    %588 = vmatpush.msra.mxu0 0.0
    %589 = vmatpush.msra.mxu0 0.0
    %590 = vmatpush.msra.mxu0 0.0
    %591 = vmatpush.msra.mxu0 0.0
    %592 = vmatpush.msra.mxu0 0.0
    %593 = vmatpush.msra.mxu0 0.0
    %594 = vmatpush.msra.mxu0 %v557
    %595 = vmatmul.f32.gmra.mxu0 %v553
    %v596 = vpop.f32.mrf.mxu0
    %v597 = vadd.f32 0.0, %v596
    %598 = vdwg.mxu0
    %v599 = vsel %vm49, %v577, -inf
    %v600 = vrot.slane %v599, 4
    %v601 = vmax.f32 %v599, %v600
    %v602 = vrot.slane %v601, 2
    %v603 = vmax.f32 %v601, %v602
    %v604 = vrot.slane %v603, 1
    %v605 = vmax.f32 %v603, %v604
    %v606 = vsel %vm49, %v597, -inf
    %v607 = vrot.slane %v606, 4
    %v608 = vmax.f32 %v606, %v607
    %v609 = vrot.slane %v608, 2
    %v610 = vmax.f32 %v608, %v609
    %v611 = vrot.slane %v610, 1
    %v612 = vmax.f32 %v610, %v611
    %v613 = vsub.f32 %v577, %v605
    %v614 = vsub.f32 %v597, %v612
    %v615 = vmul.f32 %v613, 1.442695
    %v616 = vpow.pop %v615
    %v617 = vmul.f32 %v614, 1.442695
    %v618 = vpow.pop %v617
    %v619 = vsel %vm49, %v616, 0.0
    %v620 = vrot.slane %v619, 4
    %v621 = vadd.f32 %v619, %v620
    %v622 = vrot.slane %v621, 2
    %v623 = vadd.f32 %v621, %v622
    %v624 = vrot.slane %v623, 1
    %v625 = vadd.f32 %v623, %v624
    %v626 = vsel %vm49, %v618, 0.0
    %v627 = vrot.slane %v626, 4
    %v628 = vadd.f32 %v626, %v627
    %v629 = vrot.slane %v628, 2
    %v630 = vadd.f32 %v628, %v629
    %v631 = vrot.slane %v630, 1
    %v632 = vadd.f32 %v630, %v631
    %v633 = vlog2.pop %v625
    %v634 = vmul.f32 %v633, 0.6931472
    %v635 = vlog2.pop %v632
    %v636 = vmul.f32 %v635, 0.6931472
    %v637 = vadd.f32 %v634, %v605
    %v638 = vadd.f32 %v636, %v612
    %v639 = vsub.f32 %v637, %v577
    %v640 = vsub.f32 %v638, %v597
    %v643 = vrot.slane %v640, 4
    %v644 = vsel %vm49, %v639, %v643
    %v646 = vmul.f32 %v40, %v644
    %648 = vst [vmem:[#allocation1] ss:$2 sm:$0xff] %v646
    %v649 = vld.sshfl [vmem:[#allocation1] sm:$0xff pattern:$0x75316420]
    %v650 = vld.sshfl [vmem:[#allocation1 + $0x8] sm:$0xff pattern:$0x75316420]
    %v653 = vsel %vm49, %v649, 0.0
    %v654 = vsel %vm49, %v650, 0.0
    %v655 = vadd.f32 %v653, %v654
    %656 = vadd.xlane.f32.xlu0 %v655
    %v657 = vpop.xlane.xlu0 %656
    %v658 = vrot.slane %v657, 4
    %v659 = vadd.f32 %v657, %v658
    %v660 = vrot.slane %v659, 2
    %v661 = vadd.f32 %v659, %v660
    %v662 = vrot.slane %v661, 1
    %v663 = vadd.f32 %v661, %v662
    %s664 = vtos %v663
    %v665 = vstv %s664
    %v666 = vadd.f32 %v665, 0.0
    %s667 = scalar_lea.vmem %s0, 8
    %v668 = vld [vmem:[%s667] sm:$0xff]
    %s669 = scalar_lea.vmem %s1, 8
    %v670 = vld [vmem:[%s669] sm:$0xff]
    %672 = vst [vmem:[#allocation1] ss:$2 sm:$0xff] %v668
    %v673 = vld.sshfl [vmem:[#allocation1] sm:$0xff pattern:$0x75316420]
    %v674 = vld.sshfl [vmem:[#allocation1 + $0x8] sm:$0xff pattern:$0x75316420]
    %v677 = vsel %vm49, %v673, -inf
    %v678 = vrot.slane %v677, 4
    %v679 = vmax.f32 %v677, %v678
    %v680 = vrot.slane %v679, 2
    %v681 = vmax.f32 %v679, %v680
    %v682 = vrot.slane %v681, 1
    %v683 = vmax.f32 %v681, %v682
    %v684 = vsel %vm49, %v674, -inf
    %v685 = vrot.slane %v684, 4
    %v686 = vmax.f32 %v684, %v685
    %v687 = vrot.slane %v686, 2
    %v688 = vmax.f32 %v686, %v687
    %v689 = vrot.slane %v688, 1
    %v690 = vmax.f32 %v688, %v689
    %v693 = vrot.slane %v690, 4
    %v694 = vsel %vm49, %v683, %v693
    %vm696 = vcmp.eq.f32.partialorder %v668, %v694
    %v697 = vsel %vm696, %v73, 4
    %698 = vst [vmem:[#allocation1] ss:$2 sm:$0xff] %v697
    %v699 = vld.sshfl [vmem:[#allocation1] sm:$0xff pattern:$0x75316420]
    %v700 = vld.sshfl [vmem:[#allocation1 + $0x8] sm:$0xff pattern:$0x75316420]
    %v701 = vsel %vm49, %v699, 2147483647
    %v702 = vrot.slane %v701, 4
    %vm703 = vcmp.lt.s32.totalorder %v701, %v702
    %v704 = vsel %vm703, %v701, %v702
    %v705 = vrot.slane %v704, 2
    %vm706 = vcmp.lt.s32.totalorder %v704, %v705
    %v707 = vsel %vm706, %v704, %v705
    %v708 = vrot.slane %v707, 1
    %vm709 = vcmp.lt.s32.totalorder %v707, %v708
    %v710 = vsel %vm709, %v707, %v708
    %v711 = vsel %vm49, %v700, 2147483647
    %v712 = vrot.slane %v711, 4
    %vm713 = vcmp.lt.s32.totalorder %v711, %v712
    %v714 = vsel %vm713, %v711, %v712
    %v715 = vrot.slane %v714, 2
    %vm716 = vcmp.lt.s32.totalorder %v714, %v715
    %v717 = vsel %vm716, %v714, %v715
    %v718 = vrot.slane %v717, 1
    %vm719 = vcmp.lt.s32.totalorder %v717, %v718
    %v720 = vsel %vm719, %v717, %v718
    %vm721 = vcmp.eq.s32.totalorder %v42, %v710
    %vm722 = vcmp.eq.s32.totalorder %v42, %v720
    %v723 = vsel %vm721, 1, 0
    %v724 = vsel %vm722, 1, 0
    %v725 = vcvt.s32.f32 %v723
    %v726 = vcvt.s32.f32 %v724
    %728 = vst [vmem:[#allocation1] ss:$2 sm:$0xff] %v670
    %v729 = vld.sshfl [vmem:[#allocation1] sm:$0xff pattern:$0x75316420]
    %v730 = vld.sshfl [vmem:[#allocation1 + $0x8] sm:$0xff pattern:$0x75316420]
    %v733 = vsel %vm49, %v729, -inf
    %v734 = vrot.slane %v733, 4
    %v735 = vmax.f32 %v733, %v734
    %v736 = vrot.slane %v735, 2
    %v737 = vmax.f32 %v735, %v736
    %v738 = vrot.slane %v737, 1
    %v739 = vmax.f32 %v737, %v738
    %v740 = vsel %vm49, %v730, -inf
    %v741 = vrot.slane %v740, 4
    %v742 = vmax.f32 %v740, %v741
    %v743 = vrot.slane %v742, 2
    %v744 = vmax.f32 %v742, %v743
    %v745 = vrot.slane %v744, 1
    %v746 = vmax.f32 %v744, %v745
    %v749 = vrot.slane %v746, 4
    %v750 = vsel %vm49, %v739, %v749
    %vm752 = vcmp.eq.f32.partialorder %v670, %v750
    %v753 = vsel %vm752, %v73, 4
    %754 = vst [vmem:[#allocation1] ss:$2 sm:$0xff] %v753
    %v755 = vld.sshfl [vmem:[#allocation1] sm:$0xff pattern:$0x75316420]
    %v756 = vld.sshfl [vmem:[#allocation1 + $0x8] sm:$0xff pattern:$0x75316420]
    %v757 = vsel %vm49, %v755, 2147483647
    %v758 = vrot.slane %v757, 4
    %vm759 = vcmp.lt.s32.totalorder %v757, %v758
    %v760 = vsel %vm759, %v757, %v758
    %v761 = vrot.slane %v760, 2
    %vm762 = vcmp.lt.s32.totalorder %v760, %v761
    %v763 = vsel %vm762, %v760, %v761
    %v764 = vrot.slane %v763, 1
    %vm765 = vcmp.lt.s32.totalorder %v763, %v764
    %v766 = vsel %vm765, %v763, %v764
    %v767 = vsel %vm49, %v756, 2147483647
    %v768 = vrot.slane %v767, 4
    %vm769 = vcmp.lt.s32.totalorder %v767, %v768
    %v770 = vsel %vm769, %v767, %v768
    %v771 = vrot.slane %v770, 2
    %vm772 = vcmp.lt.s32.totalorder %v770, %v771
    %v773 = vsel %vm772, %v770, %v771
    %v774 = vrot.slane %v773, 1
    %vm775 = vcmp.lt.s32.totalorder %v773, %v774
    %v776 = vsel %vm775, %v773, %v774
    %vm777 = vcmp.eq.s32.totalorder %v42, %v766
    %vm778 = vcmp.eq.s32.totalorder %v42, %v776
    %v779 = vsel %vm777, 1, 0
    %v780 = vsel %vm778, 1, 0
    %v781 = vcvt.s32.f32 %v779
    %v782 = vcvt.s32.f32 %v780
    %783 = vmatpush.xpose.msra.mxu0 0.0
    %784 = vmatpush.xpose.msra.mxu0 0.0
    %785 = vmatpush.xpose.msra.mxu0 0.0
    %786 = vmatpush.xpose.msra.mxu0 0.0
    %787 = vmatpush.xpose.msra.mxu0 0.0
    %788 = vmatpush.xpose.msra.mxu0 0.0
    %789 = vmatpush.xpose.msra.mxu0 0.0
    %790 = vmatpush.xpose.msra.mxu0 0.0
    %791 = vmatpush.xpose.msra.mxu0 0.0
    %792 = vmatpush.xpose.msra.mxu0 0.0
    %793 = vmatpush.xpose.msra.mxu0 0.0
    %794 = vmatpush.xpose.msra.mxu0 0.0
    %795 = vmatpush.xpose.msra.mxu0 0.0
    %796 = vmatpush.xpose.msra.mxu0 0.0
    %797 = vmatpush.xpose.msra.mxu0 0.0
    %798 = vmatpush.xpose.msra.mxu0 %v725
    %799 = vmatmul.f32.gmra.mxu0 %v781
    %v800 = vpop.f32.mrf.mxu0
    %v801 = vadd.f32 0.0, %v800
    %802 = vdwg.mxu0
    %803 = vmatpush.xpose.msra.mxu0 0.0
    %804 = vmatpush.xpose.msra.mxu0 0.0
    %805 = vmatpush.xpose.msra.mxu0 0.0
    %806 = vmatpush.xpose.msra.mxu0 0.0
    %807 = vmatpush.xpose.msra.mxu0 0.0
    %808 = vmatpush.xpose.msra.mxu0 0.0
    %809 = vmatpush.xpose.msra.mxu0 0.0
    %810 = vmatpush.xpose.msra.mxu0 0.0
    %811 = vmatpush.xpose.msra.mxu0 0.0
    %812 = vmatpush.xpose.msra.mxu0 0.0
    %813 = vmatpush.xpose.msra.mxu0 0.0
    %814 = vmatpush.xpose.msra.mxu0 0.0
    %815 = vmatpush.xpose.msra.mxu0 0.0
    %816 = vmatpush.xpose.msra.mxu0 0.0
    %817 = vmatpush.xpose.msra.mxu0 0.0
    %818 = vmatpush.xpose.msra.mxu0 %v726
    %819 = vmatmul.f32.gmra.mxu0 %v782
    %v820 = vpop.f32.mrf.mxu0
    %v821 = vadd.f32 %v801, %v820
    %822 = vdwg.mxu0
    %v823 = vsub.f32 0.0, %v821
    %v824 = vmul.f32 %v823, %v15
    %v825 = vmul.f32 %v823, %v16
    %v826 = vmul.f32 %v823, %v17
    %v827 = vmul.f32 %v823, %v18
    %v828 = vmul.f32 %v823, %v19
    %v829 = vmul.f32 %v823, %v20
    %v830 = vmul.f32 %v823, %v21
    %v831 = vmul.f32 %v823, %v22
    %v832 = vmul.f32 %v823, %v23
    %v833 = vmul.f32 %v823, %v24
    %v834 = vmul.f32 %v823, %v25
    %v835 = vmul.f32 %v823, %v26
    %v836 = vmul.f32 %v823, %v27
    %v837 = vmul.f32 %v823, %v28
    %v838 = vmul.f32 %v823, %v29
    %v839 = vmul.f32 %v823, %v30
    %v840 = vmul.f32 %v823, %v31
    %v841 = vmul.f32 %v823, %v32
    %v842 = vmul.f32 %v823, %v33
    %v843 = vmul.f32 %v823, %v34
    %v844 = vmul.f32 %v823, %v35
    %v845 = vmul.f32 %v823, %v36
    %v846 = vmul.f32 %v823, %v37
    %v847 = vmul.f32 %v823, %v38
    %v848 = vsel %vm225, %v824, 0.0
    %849 = vadd.xlane.f32.xlu0 %v848
    %v850 = vpop.xlane.xlu0 %849
    %v851 = vsel %vm225, %v825, 0.0
    %852 = vadd.xlane.f32.xlu0 %v851
    %v853 = vpop.xlane.xlu0 %852
    %v854 = vsel %vm225, %v826, 0.0
    %855 = vadd.xlane.f32.xlu0 %v854
    %v856 = vpop.xlane.xlu0 %855
    %v857 = vsel %vm225, %v827, 0.0
    %858 = vadd.xlane.f32.xlu0 %v857
    %v859 = vpop.xlane.xlu0 %858
    %v860 = vsel %vm225, %v828, 0.0
    %861 = vadd.xlane.f32.xlu0 %v860
    %v862 = vpop.xlane.xlu0 %861
    %v863 = vsel %vm225, %v829, 0.0
    %864 = vadd.xlane.f32.xlu0 %v863
    %v865 = vpop.xlane.xlu0 %864
    %v866 = vsel %vm225, %v830, 0.0
    %867 = vadd.xlane.f32.xlu0 %v866
    %v868 = vpop.xlane.xlu0 %867
    %v869 = vsel %vm225, %v831, 0.0
    %870 = vadd.xlane.f32.xlu0 %v869
    %v871 = vpop.xlane.xlu0 %870
    %v872 = vsel %vm225, %v832, 0.0
    %873 = vadd.xlane.f32.xlu0 %v872
    %v874 = vpop.xlane.xlu0 %873
    %v875 = vsel %vm225, %v833, 0.0
    %876 = vadd.xlane.f32.xlu0 %v875
    %v877 = vpop.xlane.xlu0 %876
    %v878 = vsel %vm225, %v834, 0.0
    %879 = vadd.xlane.f32.xlu0 %v878
    %v880 = vpop.xlane.xlu0 %879
    %v881 = vsel %vm225, %v835, 0.0
    %882 = vadd.xlane.f32.xlu0 %v881
    %v883 = vpop.xlane.xlu0 %882
    %v884 = vsel %vm225, %v836, 0.0
    %885 = vadd.xlane.f32.xlu0 %v884
    %v886 = vpop.xlane.xlu0 %885
    %v887 = vsel %vm225, %v837, 0.0
    %888 = vadd.xlane.f32.xlu0 %v887
    %v889 = vpop.xlane.xlu0 %888
    %v890 = vsel %vm225, %v838, 0.0
    %891 = vadd.xlane.f32.xlu0 %v890
    %v892 = vpop.xlane.xlu0 %891
    %v893 = vsel %vm225, %v839, 0.0
    %894 = vadd.xlane.f32.xlu0 %v893
    %v895 = vpop.xlane.xlu0 %894
    %v896 = vsel %vm225, %v840, 0.0
    %897 = vadd.xlane.f32.xlu0 %v896
    %v898 = vpop.xlane.xlu0 %897
    %v899 = vsel %vm225, %v841, 0.0
    %900 = vadd.xlane.f32.xlu0 %v899
    %v901 = vpop.xlane.xlu0 %900
    %v902 = vsel %vm225, %v842, 0.0
    %903 = vadd.xlane.f32.xlu0 %v902
    %v904 = vpop.xlane.xlu0 %903
    %v905 = vsel %vm225, %v843, 0.0
    %906 = vadd.xlane.f32.xlu0 %v905
    %v907 = vpop.xlane.xlu0 %906
    %v908 = vsel %vm225, %v844, 0.0
    %909 = vadd.xlane.f32.xlu0 %v908
    %v910 = vpop.xlane.xlu0 %909
    %v911 = vsel %vm225, %v845, 0.0
    %912 = vadd.xlane.f32.xlu0 %v911
    %v913 = vpop.xlane.xlu0 %912
    %v914 = vsel %vm225, %v846, 0.0
    %915 = vadd.xlane.f32.xlu0 %v914
    %v916 = vpop.xlane.xlu0 %915
    %v917 = vsel %vm225, %v847, 0.0
    %918 = vadd.xlane.f32.xlu0 %v917
    %v919 = vpop.xlane.xlu0 %918
    %v944 = vperm.slane %v850, %v323
    %v945 = vperm.slane %v853, %v323
    %v946 = vperm.slane %v856, %v323
    %v947 = vperm.slane %v859, %v323
    %v948 = vperm.slane %v862, %v323
    %v949 = vperm.slane %v865, %v323
    %v950 = vperm.slane %v868, %v323
    %v951 = vperm.slane %v871, %v323
    %v952 = vperm.slane %v874, %v323
    %v953 = vperm.slane %v877, %v323
    %v954 = vperm.slane %v880, %v323
    %v955 = vperm.slane %v883, %v323
    %v956 = vperm.slane %v886, %v323
    %v957 = vperm.slane %v889, %v323
    %v958 = vperm.slane %v892, %v323
    %v959 = vperm.slane %v895, %v323
    %v960 = vperm.slane %v898, %v323
    %v961 = vperm.slane %v901, %v323
    %v962 = vperm.slane %v904, %v323
    %v963 = vperm.slane %v907, %v323
    %v964 = vperm.slane %v910, %v323
    %v965 = vperm.slane %v913, %v323
    %v966 = vperm.slane %v916, %v323
    %v967 = vperm.slane %v919, %v323
    %v968 = vsel %vm348, %v945, %v944
    %v969 = vsel %vm350, %v946, %v968
    %v970 = vsel %vm352, %v947, %v969
    %v971 = vsel %vm354, %v948, %v970
    %v972 = vsel %vm356, %v949, %v971
    %v973 = vsel %vm358, %v950, %v972
    %v974 = vsel %vm360, %v951, %v973
    %v975 = vsel %vm348, %v953, %v952
    %v976 = vsel %vm350, %v954, %v975
    %v977 = vsel %vm352, %v955, %v976
    %v978 = vsel %vm354, %v956, %v977
    %v979 = vsel %vm356, %v957, %v978
    %v980 = vsel %vm358, %v958, %v979
    %v981 = vsel %vm360, %v959, %v980
    %v982 = vsel %vm348, %v961, %v960
    %v983 = vsel %vm350, %v962, %v982
    %v984 = vsel %vm352, %v963, %v983
    %v985 = vsel %vm354, %v964, %v984
    %v986 = vsel %vm356, %v965, %v985
    %v987 = vsel %vm358, %v966, %v986
    %v988 = vsel %vm360, %v967, %v987
    %v992 = vsel %vm379, %v974, 0.0
    %993 = vadd.xlane.f32.xlu0 %v992
    %v994 = vpop.xlane.xlu0 %993
    %v995 = vsel %vm379, %v981, 0.0
    %996 = vadd.xlane.f32.xlu0 %v995
    %v997 = vpop.xlane.xlu0 %996
    %v998 = vsel %vm379, %v988, 0.0
    %999 = vadd.xlane.f32.xlu0 %v998
    %v1000 = vpop.xlane.xlu0 %999
    %v1001 = vmin.f32 %v994, %v997
    %v1002 = vmin.f32 %v1001, %v1000
    %v1003 = vrot.slane %v1002, 4
    %v1004 = vmin.f32 %v1002, %v1003
    %v1005 = vrot.slane %v1004, 2
    %v1006 = vmin.f32 %v1004, %v1005
    %v1007 = vrot.slane %v1006, 1
    %v1008 = vmin.f32 %v1006, %v1007
    %vm1009 = vcmp.eq.f32.partialorder %v994, %v1008
    %vm1010 = vcmp.eq.f32.partialorder %v997, %v1008
    %vm1011 = vcmp.eq.f32.partialorder %v1000, %v1008
    %v1012 = vsel %vm1009, %v42, 24
    %v1013 = vsel %vm1010, %v389, 24
    %v1014 = vsel %vm1011, %v390, 24
    %vm1015 = vcmp.lt.s32.totalorder %v1012, %v1013
    %v1016 = vsel %vm1015, %v1012, %v1013
    %vm1017 = vcmp.lt.s32.totalorder %v1016, %v1014
    %v1018 = vsel %vm1017, %v1016, %v1014
    %v1019 = vrot.slane %v1018, 4
    %vm1020 = vcmp.lt.s32.totalorder %v1018, %v1019
    %v1021 = vsel %vm1020, %v1018, %v1019
    %v1022 = vrot.slane %v1021, 2
    %vm1023 = vcmp.lt.s32.totalorder %v1021, %v1022
    %v1024 = vsel %vm1023, %v1021, %v1022
    %v1025 = vrot.slane %v1024, 1
    %vm1026 = vcmp.lt.s32.totalorder %v1024, %v1025
    %v1027 = vsel %vm1026, %v1024, %v1025
    %vm1028 = vcmp.eq.s32.totalorder %v42, %v1027
    %vm1029 = vcmp.eq.s32.totalorder %v389, %v1027
    %vm1030 = vcmp.eq.s32.totalorder %v390, %v1027
    %v1031 = vsel %vm1028, 1, 0
    %v1032 = vsel %vm1029, 1, 0
    %v1033 = vsel %vm1030, 1, 0
    %v1034 = vcvt.s32.f32 %v1031
    %v1035 = vcvt.s32.f32 %v1032
    %v1036 = vcvt.s32.f32 %v1033
    %v1040 = vperm.slane %v1034, 0
    %v1041 = vperm.slane %v1034, 1
    %v1042 = vperm.slane %v1034, 2
    %v1043 = vperm.slane %v1034, 3
    %v1044 = vperm.slane %v1034, 4
    %v1045 = vperm.slane %v1034, 5
    %v1046 = vperm.slane %v1034, 6
    %v1047 = vperm.slane %v1034, 7
    %v1048 = vperm.slane %v1035, 0
    %v1049 = vperm.slane %v1035, 1
    %v1050 = vperm.slane %v1035, 2
    %v1051 = vperm.slane %v1035, 3
    %v1052 = vperm.slane %v1035, 4
    %v1053 = vperm.slane %v1035, 5
    %v1054 = vperm.slane %v1035, 6
    %v1055 = vperm.slane %v1035, 7
    %v1056 = vperm.slane %v1036, 0
    %v1057 = vperm.slane %v1036, 1
    %v1058 = vperm.slane %v1036, 2
    %v1059 = vperm.slane %v1036, 3
    %v1060 = vperm.slane %v1036, 4
    %v1061 = vperm.slane %v1036, 5
    %v1062 = vperm.slane %v1036, 6
    %v1063 = vperm.slane %v1036, 7
    %v1088 = vmul.f32 %v1040, %v15
    %v1089 = vmul.f32 %v1041, %v16
    %v1090 = vmul.f32 %v1042, %v17
    %v1091 = vmul.f32 %v1043, %v18
    %v1092 = vmul.f32 %v1044, %v19
    %v1093 = vmul.f32 %v1045, %v20
    %v1094 = vmul.f32 %v1046, %v21
    %v1095 = vmul.f32 %v1047, %v22
    %v1096 = vmul.f32 %v1048, %v23
    %v1097 = vmul.f32 %v1049, %v24
    %v1098 = vmul.f32 %v1050, %v25
    %v1099 = vmul.f32 %v1051, %v26
    %v1100 = vmul.f32 %v1052, %v27
    %v1101 = vmul.f32 %v1053, %v28
    %v1102 = vmul.f32 %v1054, %v29
    %v1103 = vmul.f32 %v1055, %v30
    %v1104 = vmul.f32 %v1056, %v31
    %v1105 = vmul.f32 %v1057, %v32
    %v1106 = vmul.f32 %v1058, %v33
    %v1107 = vmul.f32 %v1059, %v34
    %v1108 = vmul.f32 %v1060, %v35
    %v1109 = vmul.f32 %v1061, %v36
    %v1110 = vmul.f32 %v1062, %v37
    %v1111 = vmul.f32 %v1063, %v38
    %v1112 = vsel %vm225, %v1088, 0.0
    %v1113 = vsel %vm225, %v1089, 0.0
    %v1114 = vadd.f32 %v1112, %v1113
    %v1115 = vsel %vm225, %v1090, 0.0
    %v1116 = vadd.f32 %v1114, %v1115
    %v1117 = vsel %vm225, %v1091, 0.0
    %v1118 = vadd.f32 %v1116, %v1117
    %v1119 = vsel %vm225, %v1092, 0.0
    %v1120 = vadd.f32 %v1118, %v1119
    %v1121 = vsel %vm225, %v1093, 0.0
    %v1122 = vadd.f32 %v1120, %v1121
    %v1123 = vsel %vm225, %v1094, 0.0
    %v1124 = vadd.f32 %v1122, %v1123
    %v1125 = vsel %vm225, %v1095, 0.0
    %v1126 = vadd.f32 %v1124, %v1125
    %v1127 = vsel %vm225, %v1096, 0.0
    %v1128 = vadd.f32 %v1126, %v1127
    %v1129 = vsel %vm225, %v1097, 0.0
    %v1130 = vadd.f32 %v1128, %v1129
    %v1131 = vsel %vm225, %v1098, 0.0
    %v1132 = vadd.f32 %v1130, %v1131
    %v1133 = vsel %vm225, %v1099, 0.0
    %v1134 = vadd.f32 %v1132, %v1133
    %v1135 = vsel %vm225, %v1100, 0.0
    %v1136 = vadd.f32 %v1134, %v1135
    %v1137 = vsel %vm225, %v1101, 0.0
    %v1138 = vadd.f32 %v1136, %v1137
    %v1139 = vsel %vm225, %v1102, 0.0
    %v1140 = vadd.f32 %v1138, %v1139
    %v1141 = vsel %vm225, %v1103, 0.0
    %v1142 = vadd.f32 %v1140, %v1141
    %v1143 = vsel %vm225, %v1104, 0.0
    %v1144 = vadd.f32 %v1142, %v1143
    %v1145 = vsel %vm225, %v1105, 0.0
    %v1146 = vadd.f32 %v1144, %v1145
    %v1147 = vsel %vm225, %v1106, 0.0
    %v1148 = vadd.f32 %v1146, %v1147
    %v1149 = vsel %vm225, %v1107, 0.0
    %v1150 = vadd.f32 %v1148, %v1149
    %v1151 = vsel %vm225, %v1108, 0.0
    %v1152 = vadd.f32 %v1150, %v1151
    %v1153 = vsel %vm225, %v1109, 0.0
    %v1154 = vadd.f32 %v1152, %v1153
    %v1155 = vsel %vm225, %v1110, 0.0
    %v1156 = vadd.f32 %v1154, %v1155
    %v1157 = vsel %vm225, %v1111, 0.0
    %v1158 = vadd.f32 %v1156, %v1157
    %1159 = vst [vmem:[#allocation1] ss:$2 sm:$0xff] %v668
    %v1160 = vld.sshfl [vmem:[#allocation1] sm:$0xff pattern:$0x75316420]
    %v1161 = vld.sshfl [vmem:[#allocation1 + $0x8] sm:$0xff pattern:$0x75316420]
    %v1163 = vsel %vm379, %v1158, 0
    %v1165 = vsel %vm49, %v1160, 0
    %v1167 = vsel %vm49, %v1161, 0
    %1169 = vmatpush.msra.mxu0 0.0
    %1170 = vmatpush.msra.mxu0 0.0
    %1171 = vmatpush.msra.mxu0 0.0
    %1172 = vmatpush.msra.mxu0 0.0
    %1173 = vmatpush.msra.mxu0 0.0
    %1174 = vmatpush.msra.mxu0 0.0
    %1175 = vmatpush.msra.mxu0 0.0
    %1176 = vmatpush.msra.mxu0 0.0
    %1177 = vmatpush.msra.mxu0 0.0
    %1178 = vmatpush.msra.mxu0 0.0
    %1179 = vmatpush.msra.mxu0 0.0
    %1180 = vmatpush.msra.mxu0 0.0
    %1181 = vmatpush.msra.mxu0 0.0
    %1182 = vmatpush.msra.mxu0 0.0
    %1183 = vmatpush.msra.mxu0 0.0
    %1184 = vmatpush.msra.mxu0 %v1165
    %1185 = vmatmul.f32.gmra.mxu0 %v1163
    %v1186 = vpop.f32.mrf.mxu0
    %v1187 = vadd.f32 0.0, %v1186
    %1188 = vdwg.mxu0
    %1189 = vmatpush.msra.mxu0 0.0
    %1190 = vmatpush.msra.mxu0 0.0
    %1191 = vmatpush.msra.mxu0 0.0
    %1192 = vmatpush.msra.mxu0 0.0
    %1193 = vmatpush.msra.mxu0 0.0
    %1194 = vmatpush.msra.mxu0 0.0
    %1195 = vmatpush.msra.mxu0 0.0
    %1196 = vmatpush.msra.mxu0 0.0
    %1197 = vmatpush.msra.mxu0 0.0
    %1198 = vmatpush.msra.mxu0 0.0
    %1199 = vmatpush.msra.mxu0 0.0
    %1200 = vmatpush.msra.mxu0 0.0
    %1201 = vmatpush.msra.mxu0 0.0
    %1202 = vmatpush.msra.mxu0 0.0
    %1203 = vmatpush.msra.mxu0 0.0
    %1204 = vmatpush.msra.mxu0 %v1167
    %1205 = vmatmul.f32.gmra.mxu0 %v1163
    %v1206 = vpop.f32.mrf.mxu0
    %v1207 = vadd.f32 0.0, %v1206
    %1208 = vdwg.mxu0
    %v1209 = vsel %vm49, %v1187, -inf
    %v1210 = vrot.slane %v1209, 4
    %v1211 = vmax.f32 %v1209, %v1210
    %v1212 = vrot.slane %v1211, 2
    %v1213 = vmax.f32 %v1211, %v1212
    %v1214 = vrot.slane %v1213, 1
    %v1215 = vmax.f32 %v1213, %v1214
    %v1216 = vsel %vm49, %v1207, -inf
    %v1217 = vrot.slane %v1216, 4
    %v1218 = vmax.f32 %v1216, %v1217
    %v1219 = vrot.slane %v1218, 2
    %v1220 = vmax.f32 %v1218, %v1219
    %v1221 = vrot.slane %v1220, 1
    %v1222 = vmax.f32 %v1220, %v1221
    %v1223 = vsub.f32 %v1187, %v1215
    %v1224 = vsub.f32 %v1207, %v1222
    %v1225 = vmul.f32 %v1223, 1.442695
    %v1226 = vpow.pop %v1225
    %v1227 = vmul.f32 %v1224, 1.442695
    %v1228 = vpow.pop %v1227
    %v1229 = vsel %vm49, %v1226, 0.0
    %v1230 = vrot.slane %v1229, 4
    %v1231 = vadd.f32 %v1229, %v1230
    %v1232 = vrot.slane %v1231, 2
    %v1233 = vadd.f32 %v1231, %v1232
    %v1234 = vrot.slane %v1233, 1
    %v1235 = vadd.f32 %v1233, %v1234
    %v1236 = vsel %vm49, %v1228, 0.0
    %v1237 = vrot.slane %v1236, 4
    %v1238 = vadd.f32 %v1236, %v1237
    %v1239 = vrot.slane %v1238, 2
    %v1240 = vadd.f32 %v1238, %v1239
    %v1241 = vrot.slane %v1240, 1
    %v1242 = vadd.f32 %v1240, %v1241
    %v1243 = vlog2.pop %v1235
    %v1244 = vmul.f32 %v1243, 0.6931472
    %v1245 = vlog2.pop %v1242
    %v1246 = vmul.f32 %v1245, 0.6931472
    %v1247 = vadd.f32 %v1244, %v1215
    %v1248 = vadd.f32 %v1246, %v1222
    %v1249 = vsub.f32 %v1247, %v1187
    %v1250 = vsub.f32 %v1248, %v1207
    %v1253 = vrot.slane %v1250, 4
    %v1254 = vsel %vm49, %v1249, %v1253
    %v1256 = vmul.f32 %v670, %v1254
    %1258 = vst [vmem:[#allocation1] ss:$2 sm:$0xff] %v1256
    %v1259 = vld.sshfl [vmem:[#allocation1] sm:$0xff pattern:$0x75316420]
    %v1260 = vld.sshfl [vmem:[#allocation1 + $0x8] sm:$0xff pattern:$0x75316420]
    %v1263 = vsel %vm49, %v1259, 0.0
    %v1264 = vsel %vm49, %v1260, 0.0
    %v1265 = vadd.f32 %v1263, %v1264
    %1266 = vadd.xlane.f32.xlu0 %v1265
    %v1267 = vpop.xlane.xlu0 %1266
    %v1268 = vrot.slane %v1267, 4
    %v1269 = vadd.f32 %v1267, %v1268
    %v1270 = vrot.slane %v1269, 2
    %v1271 = vadd.f32 %v1269, %v1270
    %v1272 = vrot.slane %v1271, 1
    %v1273 = vadd.f32 %v1271, %v1272
    %s1274 = vtos %v1273
    %v1275 = vstv %s1274
    %v1276 = vadd.f32 %v666, %v1275
    %vm1277 = vcmask 0
    %1278 = vst.msk [vmem:[#allocation2] sm:$0x1] %vm1277, %v1276
    // Predicated region
    $region14: #{consistency_loss.1} parent=1 // pred_check
      _
    $region15: #{consistency_loss.1} parent=1 // pred_check_branch
      %1280 = sbr.rel (0) target = $region17
    $region16: #{consistency_loss.1} parent=1 // pred_region
      %1282 = vsyncadd [#allocation3], 0
      %s1284 = sshll.u32 [#allocation2], 4
      %s1285 = int_to_ptr.vmem [resolvable:$true] %s1284
      %s1286 = sshll.u32 %s3, 4
      %s1287 = int_to_ptr.hbm [resolvable:$true] %s1286
      %1289 = dma.vmem_to_hbm [thread:$0]  %s1285, 16, %s1287, [#allocation3]
    $region17: #{consistency_loss.1} parent=1 // pred_fallthru
      _
    // Predicated region
    $region18: #{consistency_loss.1} parent=1 // pred_check
      _
    $region19: #{consistency_loss.1} parent=1 // pred_check_branch
      %1291 = sbr.rel (0) target = $region21
    $region20: #{consistency_loss.1} parent=1 // pred_region
      %1293 = dma.done [#allocation3], 16
    $region21: #{consistency_loss.1} parent=1 // pred_fallthru
      _
    %1294 = vsyncpa [#allocation3], 1

</llo_original>
